<compile_context>
chip_gen: v6e
topology: v6e:2x2x1
jax: 0.10.0
libtpu: 0.0.40
codegen_flags: <defaults>
</compile_context>

<pallas_src>
import jax
import jax.numpy as jnp
from jax.experimental import pallas as pl
from jax.experimental.pallas import tpu as pltpu

_INV_SQRT2 = 0.7071067811865475  # 1/sqrt(2)
_LN_EPS = 1e-6


def _ffn_kernel(x_ref, w1_ref, b1_ref, w2_ref, b2_ref, gamma_ref, beta_ref,
                o_ref, acc_ref):
    """One (row-tile, H4-chunk) grid step.

    x_ref:          (TM, H)       row tile (resident across the H4 axis)
    w1_ref:         (H, TH4)      W1^T chunk
    b1_ref:         (1, TH4)      b1 chunk
    w2_ref:         (TH4, H)      W2^T chunk
    b2/gamma/beta:  (1, H)        constant small params
    o_ref:          (TM, H)       output row tile (resident across the H4 axis)
    acc_ref:        (TM, H) f32   scratch accumulator for W_2(gelu(W_1 x))
    """
    k = pl.program_id(1)

    @pl.when(k == 0)
    def _init():
        acc_ref[...] = jnp.zeros_like(acc_ref)

    x = x_ref[...]

    # --- W_1 chunk: (TM, H) @ (H, TH4) + b1 -> f32 (TM, TH4) ---------------
    h = jnp.dot(x, w1_ref[...], preferred_element_type=jnp.float32)
    h = h + b1_ref[...].astype(jnp.float32)

    # TODO(synk): dropout omitted (module evaluated in eval mode -> identity).

    # --- exact GELU (matches F.gelu default, approximate='none') -----------
    h = 0.5 * h * (1.0 + jax.lax.erf(h * _INV_SQRT2))

    # --- W_2 chunk: accumulate (TM, TH4) @ (TH4, H) into the f32 acc --------
    # `+=` keeps partial sums on the MXU result path (MRB accumulation on v7x).
    acc_ref[...] += jnp.dot(h.astype(w2_ref.dtype), w2_ref[...],
                            preferred_element_type=jnp.float32)

    @pl.when(k == pl.num_programs(1) - 1)
    def _finalize():
        # bias + residual add + LayerNorm (eps=1e-6), single-pass statistics.
        z = (acc_ref[...] + b2_ref[...].astype(jnp.float32)
             + x.astype(jnp.float32))
        inv_h = 1.0 / z.shape[-1]
        s1 = jnp.sum(z, axis=-1, keepdims=True)
        s2 = jnp.sum(z * z, axis=-1, keepdims=True)
        mean = s1 * inv_h
        var = jnp.maximum(s2 * inv_h - mean * mean, 0.0)
        zn = (z - mean) * jax.lax.rsqrt(var + _LN_EPS)
        o_ref[...] = (zn * gamma_ref[...].astype(jnp.float32)
                      + beta_ref[...].astype(jnp.float32)).astype(o_ref.dtype)


def _round_up(a, b):
    return (a + b - 1) // b * b


def _device_vmem_budget_bytes():
    """Scoped-VMEM budget: real per-core capacity minus headroom.

    Falls back to a v7x-safe 64 MiB when the capability query is unavailable.
    (Hardware query only — this affects sizing, never correctness, and does
    not mask kernel compile errors.)
    """
    cap = None
    try:
        cap = int(getattr(pltpu.get_tpu_info(), "vmem_capacity_bytes", 0)) or None
    except Exception:
        cap = None
    if cap is None:
        cap = 64 << 20
    return max(16 << 20, cap - (8 << 20))


def _h4_chunk_candidates(h4, target=512):
    """H4 chunk sizes, descending: multiples of 128 that divide H4 exactly."""
    if h4 <= target:
        return [h4]
    cands = [c for c in range(128, target + 1, 128) if h4 % c == 0]
    return sorted(cands, reverse=True) if cands else [h4]


def _row_tile_candidates(n_rows, requested):
    top = max(8, min(_round_up(int(requested), 8), _round_up(n_rows, 8)))
    return sorted({c for c in (top, 256, 128, 64, 32, 16, 8) if 8 <= c <= top},
                  reverse=True)


def _vmem_estimate(tm, th4, h, act_item, w_item):
    buf = 2  # default double-buffering on every pipelined operand
    resident = (
        buf * tm * h * act_item          # x row tiles
        + buf * tm * h * act_item        # output row tiles
        + buf * h * th4 * w_item         # W1^T chunks
        + buf * th4 * h * w_item         # W2^T chunks
        + buf * th4 * w_item             # b1 chunks
        + buf * 3 * h * 4                # b2 / gamma / beta (<= f32)
        + tm * h * 4                     # f32 accumulator scratch
    )
    temps = (3 * tm * th4 * 4            # f32 h + GELU temporaries
             + tm * th4 * w_item         # cast of h for the second matmul
             + 3 * tm * h * 4)           # LayerNorm epilogue temporaries
    return resident + temps


def positionwise_feed_forward(x, w1t, b1, w2t, b2, gamma, beta, *, tile_m=256):
    """x: (B, S, H).  w1t: (H, 4H), w2t: (4H, H) — already transposed relative
    to PyTorch nn.Linear's (out_features, in_features) weight layout.

    Never blocks; wrap in jax.jit for production use (shapes/tiles are static
    at trace time)."""
    B, S, H = x.shape
    H4 = w1t.shape[1]
    assert w1t.shape == (H, H4) and w2t.shape == (H4, H)
    N = B * S
    # No padding copy: ragged final row block is handled by Pallas (rows are
    # fully independent through both matmuls and the row-wise LayerNorm).
    x2d = x.reshape(N, H)

    act_item = x.dtype.itemsize
    w_item = w1t.dtype.itemsize
    budget = _device_vmem_budget_bytes()

    # Pick the largest (row tile, H4 chunk) pair whose footprint fits VMEM.
    cands_m = _row_tile_candidates(N, tile_m)
    cands_h4 = _h4_chunk_candidates(H4)
    tm, th4 = cands_m[-1], cands_h4[-1]
    est = _vmem_estimate(tm, th4, H, act_item, w_item)
    found = False
    for cm in cands_m:
        for ch in cands_h4:
            e = _vmem_estimate(cm, ch, H, act_item, w_item)
            if e <= budget:
                tm, th4, est, found = cm, ch, e, True
                break
        if found:
            break

    grid = (pl.cdiv(N, tm), H4 // th4)
    vmem_limit = int(min(budget, max(16 << 20, 1.5 * est + (4 << 20))))

    b1_2d = b1.reshape(1, H4)
    b2_2d = b2.reshape(1, H)
    gamma_2d = gamma.reshape(1, H)
    beta_2d = beta.reshape(1, H)

    cost = pl.CostEstimate(
        flops=4 * N * H * H4 + 10 * N * H,
        transcendentals=N * H4,
        bytes_accessed=int(
            2 * N * H * act_item                            # x in + out
            + grid[0] * (w1t.size + w2t.size) * w_item      # weight re-reads
            + (b1.size + b2.size + gamma.size + beta.size) * 4),
    )

    out2d = pl.pallas_call(
        _ffn_kernel,
        out_shape=jax.ShapeDtypeStruct((N, H), x.dtype),
        grid_spec=pltpu.PrefetchScalarGridSpec(
            num_scalar_prefetch=0,
            grid=grid,
            in_specs=[
                pl.BlockSpec((tm, H), lambda i, k: (i, 0)),    # x rows (resident over k)
                pl.BlockSpec((H, th4), lambda i, k: (0, k)),   # W1^T chunk
                pl.BlockSpec((1, th4), lambda i, k: (0, k)),   # b1 chunk
                pl.BlockSpec((th4, H), lambda i, k: (k, 0)),   # W2^T chunk
                pl.BlockSpec((1, H), lambda i, k: (0, 0)),     # b2
                pl.BlockSpec((1, H), lambda i, k: (0, 0)),     # gamma
                pl.BlockSpec((1, H), lambda i, k: (0, 0)),     # beta
            ],
            out_specs=pl.BlockSpec((tm, H), lambda i, k: (i, 0)),
            scratch_shapes=[pltpu.VMEM((tm, H), jnp.float32)],
        ),
        compiler_params=pltpu.CompilerParams(
            dimension_semantics=("parallel", "arbitrary"),
            vmem_limit_bytes=vmem_limit,
        ),
        cost_estimate=cost,
    )(x2d, w1t, b1_2d, w2t, b2_2d, gamma_2d, beta_2d)

    return out2d.reshape(B, S, H)


# ----------------------------- validation ----------------------------------

def _reference(x, w1t, b1, w2t, b2, gamma, beta):
    h = x @ w1t + b1
    h = 0.5 * h * (1.0 + jax.lax.erf(h * _INV_SQRT2))
    y = h @ w2t + b2
    z = y + x
    mean = jnp.mean(z, axis=-1, keepdims=True)
    var = jnp.mean((z - mean) ** 2, axis=-1, keepdims=True)
    return (z - mean) / jnp.sqrt(var + _LN_EPS) * gamma + beta


def _make_params(key, H, dtype):
    """Deterministic PyTorch nn.Linear-style uniform fan-in init."""
    H4 = 4 * H
    k1, kb1, k2, kb2 = jax.random.split(key, 4)
    bound1 = 1.0 / (H ** 0.5)
    w1t = jax.random.uniform(k1, (H, H4), minval=-bound1, maxval=bound1,
                             dtype=jnp.float32).astype(dtype)
    b1 = jax.random.uniform(kb1, (H4,), minval=-bound1, maxval=bound1,
                            dtype=jnp.float32).astype(dtype)
    bound2 = 1.0 / (H4 ** 0.5)
    w2t = jax.random.uniform(k2, (H4, H), minval=-bound2, maxval=bound2,
                             dtype=jnp.float32).astype(dtype)
    b2 = jax.random.uniform(kb2, (H,), minval=-bound2, maxval=bound2,
                            dtype=jnp.float32).astype(dtype)
    gamma = jnp.ones((H,), dtype=dtype)   # nn.LayerNorm default weight
    beta = jnp.zeros((H,), dtype=dtype)   # nn.LayerNorm default bias
    return w1t, b1, w2t, b2, gamma, beta


if __name__ == "__main__":
    ffn = jax.jit(positionwise_feed_forward)

    # --- f32 check at small shapes (tight tolerance) -----------------------
    kx, kp = jax.random.split(jax.random.PRNGKey(0))
    B, S, H = 2, 8, 32
    x = jax.random.normal(kx, (B, S, H), dtype=jnp.float32)
    params = _make_params(kp, H, jnp.float32)
    out = jax.block_until_ready(ffn(x, *params))
    ref = _reference(x, *params)
    assert out.shape == (B, S, H)
    assert jnp.allclose(out, ref, atol=3e-5, rtol=3e-5), "f32 mismatch vs reference"

    # --- bf16 production-path smoke check (lane-dense H, looser tolerance) --
    kx2, kp2 = jax.random.split(jax.random.PRNGKey(1))
    B2, S2, H2 = 2, 16, 128
    xb = jax.random.normal(kx2, (B2, S2, H2), dtype=jnp.float32).astype(jnp.bfloat16)
    params_b = _make_params(kp2, H2, jnp.bfloat16)
    out_b = jax.block_until_ready(ffn(xb, *params_b))
    ref_b = _reference(xb.astype(jnp.float32),
                       *(p.astype(jnp.float32) for p in params_b))
    assert out_b.shape == (B2, S2, H2)
    max_err = float(jnp.max(jnp.abs(out_b.astype(jnp.float32) - ref_b)))
    assert max_err < 0.1, f"bf16 mismatch vs reference (max abs err {max_err})"

    print("KERNEL_OK")
</pallas_src>

<mosaic_0001>
module attributes {stable_mosaic.version = 11 : i64} {
  func.func @_ffn_kernel(%arg0: i32, %arg1: i32, %arg2: memref<16x32xf32, #tpu.memory_space<vmem>>, %arg3: memref<32x128xf32, #tpu.memory_space<vmem>>, %arg4: memref<1x128xf32, #tpu.memory_space<vmem>>, %arg5: memref<128x32xf32, #tpu.memory_space<vmem>>, %arg6: memref<1x32xf32, #tpu.memory_space<vmem>>, %arg7: memref<1x32xf32, #tpu.memory_space<vmem>>, %arg8: memref<1x32xf32, #tpu.memory_space<vmem>>, %arg9: memref<16x32xf32, #tpu.memory_space<vmem>>, %arg10: memref<16x32xf32, #tpu.memory_space<vmem>>) attributes {dimension_semantics = [#tpu.dimension_semantics<parallel>, #tpu.dimension_semantics<arbitrary>], iteration_bounds = array<i64: 1, 1>, scalar_prefetch = 0 : i64, scratch_operands = 1 : i64, tpu.core_type = #tpu.core_type<tc>, window_params = [{transform_indices = @transform_0, window_bounds = array<i64: 16, 32>}, {transform_indices = @transform_1, window_bounds = array<i64: 32, 128>}, {transform_indices = @transform_2, window_bounds = array<i64: 1, 128>}, {transform_indices = @transform_3, window_bounds = array<i64: 128, 32>}, {pipeline_mode = #tpu.pipeline_mode<synchronous>, transform_indices = @transform_4, window_bounds = array<i64: 1, 32>}, {pipeline_mode = #tpu.pipeline_mode<synchronous>, transform_indices = @transform_5, window_bounds = array<i64: 1, 32>}, {pipeline_mode = #tpu.pipeline_mode<synchronous>, transform_indices = @transform_6, window_bounds = array<i64: 1, 32>}, {transform_indices = @transform_7, window_bounds = array<i64: 16, 32>}]} {
    %c0_i32 = arith.constant 0 : i32
    %0 = arith.cmpi eq, %arg1, %c0_i32 : i32
    %1 = arith.extui %0 : i1 to i32
    %c0_i32_0 = arith.constant 0 : i32
    %2 = arith.cmpi ne, %1, %c0_i32_0 : i32
    scf.if %2 {
      %cst_18 = arith.constant 0.000000e+00 : f32
      %25 = vector.broadcast %cst_18 : f32 to vector<16x32xf32>
      %c0_19 = arith.constant 0 : index
      %c0_20 = arith.constant 0 : index
      %26 = vector.load %arg10[%c0_19, %c0_20] : memref<16x32xf32, #tpu.memory_space<vmem>>, vector<16x32xf32>
      tpu.vector_store %arg10[%c0_19, %c0_20], %25 {strides = array<i32>} : memref<16x32xf32, #tpu.memory_space<vmem>>, vector<16x32xf32>,
    } else {
    }
    %c0 = arith.constant 0 : index
    %c0_1 = arith.constant 0 : index
    %3 = vector.load %arg2[%c0, %c0_1] : memref<16x32xf32, #tpu.memory_space<vmem>>, vector<16x32xf32>
    %c0_2 = arith.constant 0 : index
    %c0_3 = arith.constant 0 : index
    %4 = vector.load %arg3[%c0_2, %c0_3] : memref<32x128xf32, #tpu.memory_space<vmem>>, vector<32x128xf32>
    %cst = arith.constant dense<0.000000e+00> : vector<16x128xf32>
    %5 = tpu.matmul %3, %4, %cst {dimension_numbers = #tpu.dot_dimension_numbers<[1], [0], [0], [1], [0, 0, 1, 1], [], []>} : vector<16x32xf32>, vector<32x128xf32>, vector<16x128xf32> -> vector<16x128xf32>
    %c0_4 = arith.constant 0 : index
    %c0_5 = arith.constant 0 : index
    %6 = vector.load %arg4[%c0_4, %c0_5] : memref<1x128xf32, #tpu.memory_space<vmem>>, vector<1x128xf32>
    %7 = vector.broadcast %6 : vector<1x128xf32> to vector<16x128xf32>
    %8 = arith.addf %5, %7 : vector<16x128xf32>
    %cst_6 = arith.constant 5.000000e-01 : f32
    %9 = vector.broadcast %cst_6 : f32 to vector<16x128xf32>
    %10 = arith.mulf %9, %8 : vector<16x128xf32>
    %cst_7 = arith.constant 0.707106769 : f32
    %11 = vector.broadcast %cst_7 : f32 to vector<16x128xf32>
    %12 = arith.mulf %8, %11 : vector<16x128xf32>
    %13 = math.erf %12 : vector<16x128xf32>
    %cst_8 = arith.constant 1.000000e+00 : f32
    %14 = vector.broadcast %cst_8 : f32 to vector<16x128xf32>
    %15 = arith.addf %14, %13 : vector<16x128xf32>
    %16 = arith.mulf %10, %15 : vector<16x128xf32>
    %c0_9 = arith.constant 0 : index
    %c0_10 = arith.constant 0 : index
    %17 = vector.load %arg10[%c0_9, %c0_10] : memref<16x32xf32, #tpu.memory_space<vmem>>, vector<16x32xf32>
    %c0_11 = arith.constant 0 : index
    %c0_12 = arith.constant 0 : index
    %18 = vector.load %arg5[%c0_11, %c0_12] : memref<128x32xf32, #tpu.memory_space<vmem>>, vector<128x32xf32>
    %cst_13 = arith.constant dense<0.000000e+00> : vector<16x32xf32>
    %19 = tpu.matmul %16, %18, %cst_13 {dimension_numbers = #tpu.dot_dimension_numbers<[1], [0], [0], [1], [0, 0, 1, 1], [], []>} : vector<16x128xf32>, vector<128x32xf32>, vector<16x32xf32> -> vector<16x32xf32>
    %20 = arith.addf %17, %19 : vector<16x32xf32>
    %c0_14 = arith.constant 0 : index
    %c0_15 = arith.constant 0 : index
    %21 = vector.load %arg10[%c0_14, %c0_15] : memref<16x32xf32, #tpu.memory_space<vmem>>, vector<16x32xf32>
    tpu.vector_store %arg10[%c0_14, %c0_15], %20 {strides = array<i32>} : memref<16x32xf32, #tpu.memory_space<vmem>>, vector<16x32xf32>,
    %c0_i32_16 = arith.constant 0 : i32
    %22 = arith.cmpi eq, %arg1, %c0_i32_16 : i32
    %23 = arith.extui %22 : i1 to i32
    %c0_i32_17 = arith.constant 0 : i32
    %24 = arith.cmpi ne, %23, %c0_i32_17 : i32
    scf.if %24 {
      %c0_18 = arith.constant 0 : index
      %c0_19 = arith.constant 0 : index
      %25 = vector.load %arg10[%c0_18, %c0_19] : memref<16x32xf32, #tpu.memory_space<vmem>>, vector<16x32xf32>
      %c0_20 = arith.constant 0 : index
      %c0_21 = arith.constant 0 : index
      %26 = vector.load %arg6[%c0_20, %c0_21] : memref<1x32xf32, #tpu.memory_space<vmem>>, vector<1x32xf32>
      %27 = vector.broadcast %26 : vector<1x32xf32> to vector<16x32xf32>
      %28 = arith.addf %25, %27 : vector<16x32xf32>
      %29 = arith.addf %28, %3 : vector<16x32xf32>
      %cst_22 = arith.constant dense<0.000000e+00> : vector<16xf32>
      %30 = vector.multi_reduction <add>, %29, %cst_22 [1] : vector<16x32xf32> to vector<16xf32>
      %31 = vector.shape_cast %30 : vector<16xf32> to vector<16x1xf32>
      %32 = arith.mulf %29, %29 : vector<16x32xf32>
      %cst_23 = arith.constant dense<0.000000e+00> : vector<16xf32>
      %33 = vector.multi_reduction <add>, %32, %cst_23 [1] : vector<16x32xf32> to vector<16xf32>
      %34 = vector.shape_cast %33 : vector<16xf32> to vector<16x1xf32>
      %cst_24 = arith.constant 3.125000e-02 : f32
      %35 = vector.broadcast %cst_24 : f32 to vector<16x1xf32>
      %36 = arith.mulf %31, %35 : vector<16x1xf32>
      %cst_25 = arith.constant 3.125000e-02 : f32
      %37 = vector.broadcast %cst_25 : f32 to vector<16x1xf32>
      %38 = arith.mulf %34, %37 : vector<16x1xf32>
      %39 = arith.mulf %36, %36 : vector<16x1xf32>
      %40 = arith.subf %38, %39 : vector<16x1xf32>
      %cst_26 = arith.constant 0.000000e+00 : f32
      %41 = vector.broadcast %cst_26 : f32 to vector<16x1xf32>
      %42 = arith.maximumf %40, %41 : vector<16x1xf32>
      %43 = vector.broadcast %36 : vector<16x1xf32> to vector<16x32xf32>
      %44 = arith.subf %29, %43 : vector<16x32xf32>
      %cst_27 = arith.constant 9.99999997E-7 : f32
      %45 = vector.broadcast %cst_27 : f32 to vector<16x1xf32>
      %46 = arith.addf %42, %45 : vector<16x1xf32>
      %47 = math.rsqrt %46 : vector<16x1xf32>
      %48 = vector.broadcast %47 : vector<16x1xf32> to vector<16x32xf32>
      %49 = arith.mulf %44, %48 : vector<16x32xf32>
      %c0_28 = arith.constant 0 : index
      %c0_29 = arith.constant 0 : index
      %50 = vector.load %arg7[%c0_28, %c0_29] : memref<1x32xf32, #tpu.memory_space<vmem>>, vector<1x32xf32>
      %51 = vector.broadcast %50 : vector<1x32xf32> to vector<16x32xf32>
      %52 = arith.mulf %49, %51 : vector<16x32xf32>
      %c0_30 = arith.constant 0 : index
      %c0_31 = arith.constant 0 : index
      %53 = vector.load %arg8[%c0_30, %c0_31] : memref<1x32xf32, #tpu.memory_space<vmem>>, vector<1x32xf32>
      %54 = vector.broadcast %53 : vector<1x32xf32> to vector<16x32xf32>
      %55 = arith.addf %52, %54 : vector<16x32xf32>
      %c0_32 = arith.constant 0 : index
      %c0_33 = arith.constant 0 : index
      %56 = vector.load %arg9[%c0_32, %c0_33] : memref<16x32xf32, #tpu.memory_space<vmem>>, vector<16x32xf32>
      tpu.vector_store %arg9[%c0_32, %c0_33], %55 {strides = array<i32>} : memref<16x32xf32, #tpu.memory_space<vmem>>, vector<16x32xf32>,
    } else {
    }
    return
  }
  func.func @transform_0(%arg0: i32, %arg1: i32) -> (i32, i32) {
    %c0_i32 = arith.constant 0 : i32
    %c0_i32_0 = arith.constant 0 : i32
    return %arg0, %c0_i32 : i32, i32
  }
  func.func @transform_1(%arg0: i32, %arg1: i32) -> (i32, i32) {
    %c0_i32 = arith.constant 0 : i32
    %c0_i32_0 = arith.constant 0 : i32
    return %c0_i32, %arg1 : i32, i32
  }
  func.func @transform_2(%arg0: i32, %arg1: i32) -> (i32, i32) {
    %c0_i32 = arith.constant 0 : i32
    %c0_i32_0 = arith.constant 0 : i32
    return %c0_i32, %arg1 : i32, i32
  }
  func.func @transform_3(%arg0: i32, %arg1: i32) -> (i32, i32) {
    %c0_i32 = arith.constant 0 : i32
    %c0_i32_0 = arith.constant 0 : i32
    return %arg1, %c0_i32 : i32, i32
  }
  func.func @transform_4(%arg0: i32, %arg1: i32) -> (i32, i32) {
    %c0_i32 = arith.constant 0 : i32
    %c0_i32_0 = arith.constant 0 : i32
    %c0_i32_1 = arith.constant 0 : i32
    return %c0_i32, %c0_i32_0 : i32, i32
  }
  func.func @transform_5(%arg0: i32, %arg1: i32) -> (i32, i32) {
    %c0_i32 = arith.constant 0 : i32
    %c0_i32_0 = arith.constant 0 : i32
    %c0_i32_1 = arith.constant 0 : i32
    return %c0_i32, %c0_i32_0 : i32, i32
  }
  func.func @transform_6(%arg0: i32, %arg1: i32) -> (i32, i32) {
    %c0_i32 = arith.constant 0 : i32
    %c0_i32_0 = arith.constant 0 : i32
    %c0_i32_1 = arith.constant 0 : i32
    return %c0_i32, %c0_i32_0 : i32, i32
  }
  func.func @transform_7(%arg0: i32, %arg1: i32) -> (i32, i32) {
    %c0_i32 = arith.constant 0 : i32
    %c0_i32_0 = arith.constant 0 : i32
    return %arg0, %c0_i32 : i32, i32
  }
}

</mosaic_0001>

<llo_original>
// kernel: positionwise_feed_forward.1
$region0: #{positionwise_feed_forward.1}
  #allocation0 [shape = 'u32[]', space=smem, size = 0x4, offset = 0x4, fixed_abs, tag = 'smem constant byte address 0x4 - core index']
  #allocation1 [shape = 'u32[144,128]{1,0:T(1,128)}', space=vmem, size = 0x12000, scoped, tag = 'internal scratch']
  #allocation2 [shape = 'f32[16,32]{1,0:T(8,128)}', space=vmem, size = 0x2000, scoped, tag = 'scratch operand']
  %s0 = inlined_call_operand.vmem [shape: f32[16,32], index: 0, kind: input, shape index: {}]
  %s1 = inlined_call_operand.vmem [shape: f32[32,128], index: 1, kind: input, shape index: {}]
  %s2 = inlined_call_operand.vmem [shape: f32[1,128], index: 2, kind: input, shape index: {}]
  %s3 = inlined_call_operand.vmem [shape: f32[128,32], index: 3, kind: input, shape index: {}]
  %s4 = inlined_call_operand.vmem [shape: f32[1,32], index: 4, kind: input, shape index: {}]
  %s5 = inlined_call_operand.vmem [shape: f32[1,32], index: 5, kind: input, shape index: {}]
  %s6 = inlined_call_operand.vmem [shape: f32[1,32], index: 6, kind: input, shape index: {}]
  %s7 = inlined_call_operand.hbm [shape: f32[16,32], index: 7, kind: output, shape index: {}]
  %s8 = sld [smem:[#allocation0]]
  $region46: #{positionwise_feed_forward.1} parent=0
    _
  %s10 = ssub.s32 1, %s8
  %s11 = scalar_select 0, %s10, %s8
  $region1: #{positionwise_feed_forward.1} parent=0
    #allocation3 [shape = 'u8[8192]{0}', space=vmem, size = 0x2000, scoped, tag = 'output window, operand 0, single buffered']
    #allocation4 [shape = 's32[1]{0}', space=sflag, size = 0x4, scoped, tag = 'scoped memory for positionwise_feed_forward.1']
    %12 = vsyncpa [#allocation4], 0
    // Predicated region
    $region2: #{positionwise_feed_forward.1} parent=1 // pred_check
      _
    $region3: #{positionwise_feed_forward.1} parent=1 // pred_check_branch
      %14 = sbr.rel (0) target = $region5
    $region4: #{positionwise_feed_forward.1} parent=1 // pred_region
      _
    $region5: #{positionwise_feed_forward.1} parent=1 // pred_fallthru
      _
    // Predicated region
    $region6: #{positionwise_feed_forward.1} parent=1 // pred_check
      _
    $region7: #{positionwise_feed_forward.1} parent=1 // pred_check_branch
      %16 = sbr.rel (0) target = $region9
    $region8: #{positionwise_feed_forward.1} parent=1 // pred_region
      _
    $region9: #{positionwise_feed_forward.1} parent=1 // pred_fallthru
      _
    // Predicated region
    $region10: #{positionwise_feed_forward.1} parent=1 // pred_check
      _
    $region11: #{positionwise_feed_forward.1} parent=1 // pred_check_branch
      %18 = sbr.rel (0) target = $region13
    $region12: #{positionwise_feed_forward.1} parent=1 // pred_region
      _
    $region13: #{positionwise_feed_forward.1} parent=1 // pred_fallthru
      _
    // Predicated region
    $region14: #{positionwise_feed_forward.1} parent=1 // pred_check
      _
    $region15: #{positionwise_feed_forward.1} parent=1 // pred_check_branch
      %20 = sbr.rel (0) target = $region17
    $region16: #{positionwise_feed_forward.1} parent=1 // pred_region
      _
    $region17: #{positionwise_feed_forward.1} parent=1 // pred_fallthru
      _
    // Predicated region
    $region18: #{positionwise_feed_forward.1} parent=1 // pred_check
      _
    $region19: #{positionwise_feed_forward.1} parent=1 // pred_check_branch
      %22 = sbr.rel (0) target = $region21
    $region20: #{positionwise_feed_forward.1} parent=1 // pred_region
      _
    $region21: #{positionwise_feed_forward.1} parent=1 // pred_fallthru
      _
    // Predicated region
    $region22: #{positionwise_feed_forward.1} parent=1 // pred_check
      _
    $region23: #{positionwise_feed_forward.1} parent=1 // pred_check_branch
      %24 = sbr.rel (0) target = $region25
    $region24: #{positionwise_feed_forward.1} parent=1 // pred_region
      _
    $region25: #{positionwise_feed_forward.1} parent=1 // pred_fallthru
      _
    // Predicated region
    $region26: #{positionwise_feed_forward.1} parent=1 // pred_check
      _
    $region27: #{positionwise_feed_forward.1} parent=1 // pred_check_branch
      %26 = sbr.rel (0) target = $region29
    $region28: #{positionwise_feed_forward.1} parent=1 // pred_region
      _
    $region29: #{positionwise_feed_forward.1} parent=1 // pred_fallthru
      _
    %p27 = scmp.eq.s32.totalorder 0, 0
    // Predicated region
    $region30: #{positionwise_feed_forward.1} parent=1 // pred_check
      %p28 = pneg %p27
    $region31: #{positionwise_feed_forward.1} parent=1 // pred_check_branch
      %30 = sbr.rel (%p28) target = $region33
    $region32: #{positionwise_feed_forward.1} parent=1 // pred_region
      %vm31 = vcmask 261120
      %32 = vst.msk [vmem:[#allocation2] sm:$0xff] %vm31, 0.0
      %33 = vst.msk [vmem:[#allocation2 + $0x8] sm:$0xff] %vm31, 0.0
    $region33: #{positionwise_feed_forward.1} parent=1 // pred_fallthru
      _
    %v34 = vld [vmem:[%s0] sm:$0xff]
    %v35 = vld [vmem:[%s0 + $0x8] sm:$0xff]
    %v36 = vld [vmem:[%s1] sm:$0xff]
    %v37 = vld [vmem:[%s1 + $0x8] sm:$0xff]
    %v38 = vld [vmem:[%s1 + $0x10] sm:$0xff]
    %v39 = vld [vmem:[%s1 + $0x18] sm:$0xff]
    %v40 = vld [vmem:[%s2] sm:$0x1]
    %v42 = vlaneseq
    %v43 = vshrl.u32 %v42, 7
    %v44 = vsub.s32 0, %v43
    %v45 = vrot.slane %v40, %v44
    %vm47 = vcmask 261120
    %v49 = vsel %vm47, %v34, 0
    %v52 = vsel %vm47, %v35, 0
    %54 = vmatprep.subr.mxu0 0.0
    %55 = vmatpush1.msra.mxu0 0.0
    %56 = vmatprep.subr.mxu0 0.0
    %57 = vmatpush1.msra.mxu0 0.0
    %58 = vmatprep.subr.mxu0 0.0
    %59 = vmatpush1.msra.mxu0 0.0
    %60 = vmatprep.subr.mxu0 0.0
    %61 = vmatpush1.msra.mxu0 0.0
    %62 = vmatprep.subr.mxu0 0.0
    %63 = vmatpush1.msra.mxu0 0.0
    %64 = vmatprep.subr.mxu0 0.0
    %65 = vmatpush1.msra.mxu0 0.0
    %66 = vmatprep.subr.mxu0 0.0
    %67 = vmatpush1.msra.mxu0 0.0
    %68 = vmatprep.subr.mxu0 0.0
    %69 = vmatpush1.msra.mxu0 0.0
    %70 = vmatprep.subr.mxu0 0.0
    %71 = vmatpush1.msra.mxu0 0.0
    %72 = vmatprep.subr.mxu0 0.0
    %73 = vmatpush1.msra.mxu0 0.0
    %74 = vmatprep.subr.mxu0 0.0
    %75 = vmatpush1.msra.mxu0 0.0
    %76 = vmatprep.subr.mxu0 0.0
    %77 = vmatpush1.msra.mxu0 0.0
    %78 = vmatprep.subr.mxu0 0.0
    %79 = vmatpush1.msra.mxu0 %v39
    %80 = vmatprep.subr.mxu0 0.0
    %81 = vmatpush1.msra.mxu0 %v38
    %82 = vmatprep.subr.mxu0 0.0
    %83 = vmatpush1.msra.mxu0 %v37
    %84 = vmatprep.subr.mxu0 0.0
    %85 = vmatpush1.msra.mxu0 %v36
    %86 = vmatprep.subr.mxu0 0.0
    %87 = vmatpush2.msra.mxu0 0.0
    %88 = vmatprep.subr.mxu0 0.0
    %89 = vmatpush2.msra.mxu0 0.0
    %90 = vmatprep.subr.mxu0 0.0
    %91 = vmatpush2.msra.mxu0 0.0
    %92 = vmatprep.subr.mxu0 0.0
    %93 = vmatpush2.msra.mxu0 0.0
    %94 = vmatprep.subr.mxu0 0.0
    %95 = vmatpush2.msra.mxu0 0.0
    %96 = vmatprep.subr.mxu0 0.0
    %97 = vmatpush2.msra.mxu0 0.0
    %98 = vmatprep.subr.mxu0 0.0
    %99 = vmatpush2.msra.mxu0 0.0
    %100 = vmatprep.subr.mxu0 0.0
    %101 = vmatpush2.msra.mxu0 0.0
    %102 = vmatprep.subr.mxu0 0.0
    %103 = vmatpush2.msra.mxu0 0.0
    %104 = vmatprep.subr.mxu0 0.0
    %105 = vmatpush2.msra.mxu0 0.0
    %106 = vmatprep.subr.mxu0 0.0
    %107 = vmatpush2.msra.mxu0 0.0
    %108 = vmatprep.subr.mxu0 0.0
    %109 = vmatpush2.msra.mxu0 0.0
    %110 = vmatprep.subr.mxu0 0.0
    %111 = vmatpush2.msra.mxu0 0.0
    %112 = vmatprep.subr.mxu0 0.0
    %113 = vmatpush2.msra.mxu0 0.0
    %114 = vmatprep.subr.mxu0 0.0
    %115 = vmatpush2.msra.mxu0 0.0
    %116 = vmatprep.subr.mxu0 0.0
    %117 = vmatpush2.msra.mxu0 0.0
    %118 = vmatprep.mubr.f32.mxu0 0.0
    %119 = vmatmul.mubr.f32.gmra.mxu0 %v49
    %v120 = vpop.f32.mrf.mxu0
    %v121 = vadd.f32 %v45, %v120
    %v122 = vpop.f32.mrf.mxu0
    %123 = vmatprep.mubr.f32.mxu0 0.0
    %124 = vmatmul.mubr.f32.gmra.mxu0 %v52
    %v125 = vpop.f32.mrf.mxu0
    %v126 = vadd.f32 %v45, %v125
    %v127 = vpop.f32.mrf.mxu0
    %128 = vdwg.mxu0
    %v129 = vmul.f32 %v121, 0.5
    %v130 = vmul.f32 %v126, 0.5
    %v131 = vmul.f32 %v121, 0.70710677
    %v132 = vmul.f32 %v126, 0.70710677
    %v133 = verf.f32.pop %v131
    %v134 = verf.f32.pop %v132
    %v135 = vadd.f32 %v133, 1.0
    %v136 = vadd.f32 %v134, 1.0
    %v137 = vmul.f32 %v129, %v135
    %v138 = vmul.f32 %v130, %v136
    %v139 = vld [vmem:[#allocation2] sm:$0xff]
    %v140 = vld [vmem:[#allocation2 + $0x8] sm:$0xff]
    %v141 = vld [vmem:[%s3] sm:$0xff]
    %v142 = vld [vmem:[%s3 + $0x8] sm:$0xff]
    %v143 = vld [vmem:[%s3 + $0x10] sm:$0xff]
    %v144 = vld [vmem:[%s3 + $0x18] sm:$0xff]
    %v145 = vld [vmem:[%s3 + $0x20] sm:$0xff]
    %v146 = vld [vmem:[%s3 + $0x28] sm:$0xff]
    %v147 = vld [vmem:[%s3 + $0x30] sm:$0xff]
    %v148 = vld [vmem:[%s3 + $0x38] sm:$0xff]
    %v149 = vld [vmem:[%s3 + $0x40] sm:$0xff]
    %v150 = vld [vmem:[%s3 + $0x48] sm:$0xff]
    %v151 = vld [vmem:[%s3 + $0x50] sm:$0xff]
    %v152 = vld [vmem:[%s3 + $0x58] sm:$0xff]
    %v153 = vld [vmem:[%s3 + $0x60] sm:$0xff]
    %v154 = vld [vmem:[%s3 + $0x68] sm:$0xff]
    %v155 = vld [vmem:[%s3 + $0x70] sm:$0xff]
    %v156 = vld [vmem:[%s3 + $0x78] sm:$0xff]
    %157 = vmatprep.subr.mxu0 0.0
    %158 = vmatpush1.msra.mxu0 %v156
    %159 = vmatprep.subr.mxu0 0.0
    %160 = vmatpush1.msra.mxu0 %v155
    %161 = vmatprep.subr.mxu0 0.0
    %162 = vmatpush1.msra.mxu0 %v154
    %163 = vmatprep.subr.mxu0 0.0
    %164 = vmatpush1.msra.mxu0 %v153
    %165 = vmatprep.subr.mxu0 0.0
    %166 = vmatpush1.msra.mxu0 %v152
    %167 = vmatprep.subr.mxu0 0.0
    %168 = vmatpush1.msra.mxu0 %v151
    %169 = vmatprep.subr.mxu0 0.0
    %170 = vmatpush1.msra.mxu0 %v150
    %171 = vmatprep.subr.mxu0 0.0
    %172 = vmatpush1.msra.mxu0 %v149
    %173 = vmatprep.subr.mxu0 0.0
    %174 = vmatpush1.msra.mxu0 %v148
    %175 = vmatprep.subr.mxu0 0.0
    %176 = vmatpush1.msra.mxu0 %v147
    %177 = vmatprep.subr.mxu0 0.0
    %178 = vmatpush1.msra.mxu0 %v146
    %179 = vmatprep.subr.mxu0 0.0
    %180 = vmatpush1.msra.mxu0 %v145
    %181 = vmatprep.subr.mxu0 0.0
    %182 = vmatpush1.msra.mxu0 %v144
    %183 = vmatprep.subr.mxu0 0.0
    %184 = vmatpush1.msra.mxu0 %v143
    %185 = vmatprep.subr.mxu0 0.0
    %186 = vmatpush1.msra.mxu0 %v142
    %187 = vmatprep.subr.mxu0 0.0
    %188 = vmatpush1.msra.mxu0 %v141
    %189 = vmatprep.subr.mxu0 0.0
    %190 = vmatpush2.msra.mxu0 0.0
    %191 = vmatprep.subr.mxu0 0.0
    %192 = vmatpush2.msra.mxu0 0.0
    %193 = vmatprep.subr.mxu0 0.0
    %194 = vmatpush2.msra.mxu0 0.0
    %195 = vmatprep.subr.mxu0 0.0
    %196 = vmatpush2.msra.mxu0 0.0
    %197 = vmatprep.subr.mxu0 0.0
    %198 = vmatpush2.msra.mxu0 0.0
    %199 = vmatprep.subr.mxu0 0.0
    %200 = vmatpush2.msra.mxu0 0.0
    %201 = vmatprep.subr.mxu0 0.0
    %202 = vmatpush2.msra.mxu0 0.0
    %203 = vmatprep.subr.mxu0 0.0
    %204 = vmatpush2.msra.mxu0 0.0
    %205 = vmatprep.subr.mxu0 0.0
    %206 = vmatpush2.msra.mxu0 0.0
    %207 = vmatprep.subr.mxu0 0.0
    %208 = vmatpush2.msra.mxu0 0.0
    %209 = vmatprep.subr.mxu0 0.0
    %210 = vmatpush2.msra.mxu0 0.0
    %211 = vmatprep.subr.mxu0 0.0
    %212 = vmatpush2.msra.mxu0 0.0
    %213 = vmatprep.subr.mxu0 0.0
    %214 = vmatpush2.msra.mxu0 0.0
    %215 = vmatprep.subr.mxu0 0.0
    %216 = vmatpush2.msra.mxu0 0.0
    %217 = vmatprep.subr.mxu0 0.0
    %218 = vmatpush2.msra.mxu0 0.0
    %219 = vmatprep.subr.mxu0 0.0
    %220 = vmatpush2.msra.mxu0 0.0
    %221 = vmatprep.mubr.f32.mxu0 0.0
    %222 = vmatmul.mubr.f32.gmra.mxu0 %v137
    %v223 = vpop.f32.mrf.mxu0
    %v224 = vadd.f32 0.0, %v223
    %v225 = vpop.f32.mrf.mxu0
    %226 = vmatprep.mubr.f32.mxu0 0.0
    %227 = vmatmul.mubr.f32.gmra.mxu0 %v138
    %v228 = vpop.f32.mrf.mxu0
    %v229 = vadd.f32 0.0, %v228
    %v230 = vpop.f32.mrf.mxu0
    %231 = vdwg.mxu0
    %v232 = vadd.f32 %v139, %v224
    %v233 = vadd.f32 %v140, %v229
    %234 = vst.msk [vmem:[#allocation2] sm:$0xff] %vm47, %v232
    %235 = vst.msk [vmem:[#allocation2 + $0x8] sm:$0xff] %vm47, %v233
    // Predicated region
    $region34: #{positionwise_feed_forward.1} parent=1 // pred_check
      %p236 = pneg %p27
    $region35: #{positionwise_feed_forward.1} parent=1 // pred_check_branch
      %238 = sbr.rel (%p236) target = $region37
    $region36: #{positionwise_feed_forward.1} parent=1 // pred_region
      %v239 = vld [vmem:[#allocation2] sm:$0xff]
      %v240 = vld [vmem:[#allocation2 + $0x8] sm:$0xff]
      %v241 = vld [vmem:[%s4] sm:$0x1]
      %v243 = vlaneseq
      %v244 = vshrl.u32 %v243, 7
      %v245 = vsub.s32 0, %v244
      %v246 = vrot.slane %v241, %v245
      %v248 = vadd.f32 %v239, %v246
      %v249 = vadd.f32 %v240, %v246
      %v250 = vadd.f32 %v248, %v34
      %v251 = vadd.f32 %v249, %v35
      %v252 = vsel %vm47, %v250, 0.0
      %253 = vadd.xlane.f32.xlu0 %v252
      %v254 = vpop.xlane.xlu0 %253
      %v255 = vsel %vm47, %v251, 0.0
      %256 = vadd.xlane.f32.xlu0 %v255
      %v257 = vpop.xlane.xlu0 %256
      %v258 = vmul.f32 %v250, %v250
      %v259 = vmul.f32 %v251, %v251
      %v260 = vsel %vm47, %v258, 0.0
      %261 = vadd.xlane.f32.xlu0 %v260
      %v262 = vpop.xlane.xlu0 %261
      %v263 = vsel %vm47, %v259, 0.0
      %264 = vadd.xlane.f32.xlu0 %v263
      %v265 = vpop.xlane.xlu0 %264
      %v266 = vmul.f32 %v254, 0.03125
      %v267 = vmul.f32 %v257, 0.03125
      %v268 = vmul.f32 %v262, 0.03125
      %v269 = vmul.f32 %v265, 0.03125
      %v270 = vmul.f32 %v266, %v266
      %v271 = vmul.f32 %v267, %v267
      %v272 = vsub.f32 %v268, %v270
      %v273 = vsub.f32 %v269, %v271
      %v274 = vmax.f32 %v272, 0.0
      %v275 = vmax.f32 %v273, 0.0
      %v276 = vsub.f32 %v250, %v266
      %v277 = vsub.f32 %v251, %v267
      %v278 = vadd.f32 %v274, 1e-06
      %v279 = vadd.f32 %v275, 1e-06
      %v280 = vrsqrt.pop %v278
      %v281 = vrsqrt.pop %v279
      %v282 = vmul.f32 %v276, %v280
      %v283 = vmul.f32 %v277, %v281
      %v284 = vld [vmem:[%s5] sm:$0x1]
      %v286 = vlaneseq
      %v287 = vshrl.u32 %v286, 7
      %v288 = vsub.s32 0, %v287
      %v289 = vrot.slane %v284, %v288
      %v291 = vmul.f32 %v282, %v289
      %v292 = vmul.f32 %v283, %v289
      %v293 = vld [vmem:[%s6] sm:$0x1]
      %v295 = vlaneseq
      %v296 = vshrl.u32 %v295, 7
      %v297 = vsub.s32 0, %v296
      %v298 = vrot.slane %v293, %v297
      %v300 = vadd.f32 %v291, %v298
      %v301 = vadd.f32 %v292, %v298
      %302 = vst.msk [vmem:[#allocation3] sm:$0xff] %vm47, %v300
      %303 = vst.msk [vmem:[#allocation3 + $0x8] sm:$0xff] %vm47, %v301
    $region37: #{positionwise_feed_forward.1} parent=1 // pred_fallthru
      _
    // Predicated region
    $region38: #{positionwise_feed_forward.1} parent=1 // pred_check
      _
    $region39: #{positionwise_feed_forward.1} parent=1 // pred_check_branch
      %305 = sbr.rel (0) target = $region41
    $region40: #{positionwise_feed_forward.1} parent=1 // pred_region
      %s307 = ssub.s32 256, 256
      %308 = vsyncadd [#allocation4], %s307
      %s309 = sshll.u32 [#allocation3], 4
      %s310 = int_to_ptr.vmem [resolvable:$true] %s309
      %315 = dma.vmem_to_hbm [thread:$0]  %s310, 256, %s7, [#allocation4], 128, 128, 8
    $region41: #{positionwise_feed_forward.1} parent=1 // pred_fallthru
      _
    // Predicated region
    $region42: #{positionwise_feed_forward.1} parent=1 // pred_check
      _
    $region43: #{positionwise_feed_forward.1} parent=1 // pred_check_branch
      %317 = sbr.rel (0) target = $region45
    $region44: #{positionwise_feed_forward.1} parent=1 // pred_region
      %318 = dma.done [#allocation4], 256
    $region45: #{positionwise_feed_forward.1} parent=1 // pred_fallthru
      _
    %319 = vsyncpa [#allocation4], 1

</llo_original>
